<compile_context>
chip_gen: v7x
topology: tpu7x:2x2x1
jax: 0.10.0
libtpu: 0.0.40
codegen_flags: <defaults>
</compile_context>

<pallas_src>
import jax
import jax.numpy as jnp
from jax.experimental import pallas as pl
from jax.experimental.pallas import tpu as pltpu

_LANES = 128      # vreg lane width
_SUBLANES = 8     # f32 vreg sublane count
_VMEM_LIMIT = 32 << 20


def _round_up(x: int, m: int) -> int:
    return ((x + m - 1) // m) * m


def _sigmoid(z):
    # sigmoid(z) == 0.5 * (tanh(z / 2) + 1): one EUP tanh + two VPU ops,
    # no f32 divide (the exact 1/(1+exp(-z)) costs exp + reciprocal+Newton).
    return 0.5 * jnp.tanh(0.5 * z) + 0.5


# ---------------------------------------------------------------------------
# input_size == 1 fast path: the linear layer degenerates to an elementwise
# scalar multiply-add, so the batch is laid out as a lane-dense (rows, 128)
# slab for both input and output (pure VPU + EUP work, unmasked full stores).
# ---------------------------------------------------------------------------
def _logreg_1d_kernel(x_ref, w_ref, b_ref, o_ref):
    z = x_ref[...] * w_ref[0] + b_ref[0]          # (tile_rows, 128)
    o_ref[...] = _sigmoid(z).astype(o_ref.dtype)


def _forward_1d(x, weight, bias, *, max_tile_rows=4096):
    # max_tile_rows=4096 -> 2 MiB x blocks: ~85%+ of HBM roofline while
    # keeping total resident VMEM (2x in + 2x out = 8 MiB) comfortable on
    # v5e / v6e / v7x.
    n = x.shape[0]
    rows = _round_up(pl.cdiv(n, _LANES), _SUBLANES)
    if rows > 2 * _SUBLANES:
        # v7x megacore: aim for at least 2 grid steps.
        tile_rows = min(max_tile_rows, _round_up(pl.cdiv(rows, 2), _SUBLANES))
    else:
        tile_rows = rows
    rows_pad = _round_up(rows, tile_rows)
    n_pad = rows_pad * _LANES

    flat = x.reshape(-1)
    if n_pad != n:
        # TODO(synk): the pad/reshape + final slice cost ~2 extra HBM passes
        # of N floats; callers that can consume the (rows, 128) slab directly
        # (or fuse this under their own jit) should do so.
        flat = jnp.pad(flat, (0, n_pad - n))
    xf = flat.reshape(rows_pad, _LANES)

    out = pl.pallas_call(
        _logreg_1d_kernel,
        out_shape=jax.ShapeDtypeStruct((rows_pad, _LANES), jnp.float32),
        grid=(rows_pad // tile_rows,),
        in_specs=[
            pl.BlockSpec((tile_rows, _LANES), lambda i: (i, 0)),     # x slab
            pl.BlockSpec(memory_space=pltpu.MemorySpace.SMEM),       # w scalar
            pl.BlockSpec(memory_space=pltpu.MemorySpace.SMEM),       # b scalar
        ],
        out_specs=pl.BlockSpec((tile_rows, _LANES), lambda i: (i, 0)),
        compiler_params=pltpu.CompilerParams(
            dimension_semantics=("parallel",),
            vmem_limit_bytes=_VMEM_LIMIT),
    )(xf, weight.reshape(-1), bias.reshape(-1))

    return out.reshape(-1)[:n].reshape(n, 1)


# ---------------------------------------------------------------------------
# general input_size > 1 path: batch-tiled GEMV.  Weight stays lane-dense as
# (1, D) and resident in VMEM; bias is an SMEM scalar.  The per-tile reduce
# result is packed onto lanes so the output slab gets unmasked, lane-dense
# stores (no (tile_n, 1) lane-padded output buffers).
# ---------------------------------------------------------------------------
def _logreg_gemv_kernel(x_ref, w_ref, b_ref, o_ref):
    # x_ref: (tile_n, D) | w_ref: (1, D) resident | b_ref: (1,) SMEM
    # o_ref: (1, tile_n // 128, 128) lane-dense output slab
    x = x_ref[...]
    w = w_ref[...]
    z = jnp.sum(x * w, axis=-1)                       # (tile_n,) VPU + XLU
    g, lanes = o_ref.shape[1], o_ref.shape[2]
    zp = z.reshape(g, lanes) + b_ref[0]               # pack batch rows on lanes
    o_ref[0] = _sigmoid(zp).astype(o_ref.dtype)


def _forward_nd(x, weight, bias, *, x_block_bytes=2 << 20, max_tile_rows=16384):
    n, d = x.shape
    bytes_per_row = d * 4

    # ~2 MiB x blocks hit ~85% of HBM roofline; cap rows so the skinny reduce
    # intermediate stays small; floor at one 128-row slab for very large D.
    tile_n = (x_block_bytes // bytes_per_row) // _LANES * _LANES
    tile_n = max(_LANES, min(tile_n, max_tile_rows))
    # v7x megacore: keep at least 2 grid steps whenever the batch allows it.
    tile_n = min(tile_n, max(_LANES, _round_up(pl.cdiv(n, 2), _LANES)))
    # TODO(synk): for very large D (a single 128-row block no longer fits
    # VMEM), add a reduction grid axis over D with a VMEM f32 accumulator
    # (pl.when init / finalize) instead of a single full-D block.

    grid_n = pl.cdiv(n, tile_n)
    if grid_n == 1 and tile_n != n:
        # Whole batch fits in one (<= ~2 MiB) block: a tiny pad is cheaper
        # than any masking logic.  Multi-block grids are NOT padded -- the
        # ragged last block uses Pallas' masked partial-block reads and the
        # garbage rows are dropped by the [:n] slice below.
        x_in = jnp.pad(x, ((0, tile_n - n), (0, 0)))
    else:
        x_in = x

    g = tile_n // _LANES
    out = pl.pallas_call(
        _logreg_gemv_kernel,
        out_shape=jax.ShapeDtypeStruct((grid_n, g, _LANES), jnp.float32),
        grid=(grid_n,),
        in_specs=[
            pl.BlockSpec((tile_n, d), lambda i: (i, 0)),             # x tile
            pl.BlockSpec((1, d), lambda i: (0, 0)),                  # w resident
            pl.BlockSpec(memory_space=pltpu.MemorySpace.SMEM),       # b scalar
        ],
        out_specs=pl.BlockSpec((1, g, _LANES), lambda i: (i, 0, 0)),
        compiler_params=pltpu.CompilerParams(
            dimension_semantics=("parallel",),
            vmem_limit_bytes=_VMEM_LIMIT),
    )(x_in, weight.reshape(1, d), bias.reshape(-1))

    return out.reshape(-1)[:n].reshape(n, 1)


def logistic_regression_forward(x, weight, bias):
    """x: [N, D] f32, weight: [1, D] f32 (PyTorch nn.Linear layout), bias: [1] f32.

    Returns sigmoid(x @ weight.T + bias) with shape [N, 1].
    """
    x = x.astype(jnp.float32)
    weight = weight.astype(jnp.float32)
    bias = bias.astype(jnp.float32)
    _, d = x.shape
    if d == 1:
        return _forward_1d(x, weight, bias)
    return _forward_nd(x, weight, bias)


if __name__ == "__main__":
    # Lesson data: input_size = 1, batch = 9 (logistic-regression-1d).
    data = jnp.array([1, 2, 3, 2.5, 2.7, 13, 13.2, 13.3, 14], dtype=jnp.float32)
    x1 = data.reshape(-1, 1)                          # [9, 1]

    key = jax.random.PRNGKey(0)
    k_w1, k_b1, k_x2, k_w2, k_b2, k_x3 = jax.random.split(key, 6)

    # nn.Linear-style uniform(-1/sqrt(D), 1/sqrt(D)) init, input_size = 1.
    in1 = 1
    bound1 = 1.0 / (in1 ** 0.5)
    w1 = jax.random.uniform(k_w1, (1, in1), minval=-bound1, maxval=bound1,
                            dtype=jnp.float32)        # PyTorch layout [1, 1]
    b1 = jax.random.uniform(k_b1, (1,), minval=-bound1, maxval=bound1,
                            dtype=jnp.float32)

    out1 = jax.block_until_ready(logistic_regression_forward(x1, w1, b1))
    ref1 = jax.nn.sigmoid(x1 @ w1.T + b1)
    assert out1.shape == (x1.shape[0], 1), out1.shape
    assert jnp.allclose(out1, ref1, atol=1e-5, rtol=1e-5)

    # General (input_size > 1) GEMV path, single-block case.
    n2, in2 = 64, 16
    bound2 = 1.0 / (in2 ** 0.5)
    x2 = jax.random.normal(k_x2, (n2, in2), dtype=jnp.float32)
    w2 = jax.random.uniform(k_w2, (1, in2), minval=-bound2, maxval=bound2,
                            dtype=jnp.float32)
    b2 = jax.random.uniform(k_b2, (1,), minval=-bound2, maxval=bound2,
                            dtype=jnp.float32)

    out2 = jax.block_until_ready(logistic_regression_forward(x2, w2, b2))
    ref2 = jax.nn.sigmoid(x2 @ w2.T + b2)
    assert out2.shape == (n2, 1), out2.shape
    assert jnp.allclose(out2, ref2, atol=1e-5, rtol=1e-5)

    # GEMV path with a multi-block grid and a ragged (unpadded) last block.
    n3 = 300
    x3 = jax.random.normal(k_x3, (n3, in2), dtype=jnp.float32)
    out3 = jax.block_until_ready(logistic_regression_forward(x3, w2, b2))
    ref3 = jax.nn.sigmoid(x3 @ w2.T + b2)
    assert out3.shape == (n3, 1), out3.shape
    assert jnp.allclose(out3, ref3, atol=1e-5, rtol=1e-5)

    print("KERNEL_OK")
</pallas_src>

<mosaic_0001>
module attributes {stable_mosaic.version = 11 : i64} {
  func.func @_logreg_1d_kernel(%arg0: i32, %arg1: memref<8x128xf32, #tpu.memory_space<vmem>>, %arg2: memref<1xf32, #tpu.memory_space<smem>>, %arg3: memref<1xf32, #tpu.memory_space<smem>>, %arg4: memref<8x128xf32, #tpu.memory_space<vmem>>) attributes {dimension_semantics = [#tpu.dimension_semantics<parallel>], iteration_bounds = array<i64: 1>, scalar_prefetch = 0 : i64, scratch_operands = 0 : i64, tpu.core_type = #tpu.core_type<tc>, window_params = [{transform_indices = @transform_0, window_bounds = array<i64: 8, 128>}, {transform_indices = @transform_1, window_bounds = array<i64: 1>}, {transform_indices = @transform_2, window_bounds = array<i64: 1>}, {transform_indices = @transform_3, window_bounds = array<i64: 8, 128>}]} {
    %c0 = arith.constant 0 : index
    %c0_0 = arith.constant 0 : index
    %0 = vector.load %arg1[%c0, %c0_0] : memref<8x128xf32, #tpu.memory_space<vmem>>, vector<8x128xf32>
    %c0_1 = arith.constant 0 : index
    %1 = memref.load %arg2[%c0_1] : memref<1xf32, #tpu.memory_space<smem>>
    %2 = vector.broadcast %1 : f32 to vector<8x128xf32>
    %3 = arith.mulf %0, %2 : vector<8x128xf32>
    %c0_2 = arith.constant 0 : index
    %4 = memref.load %arg3[%c0_2] : memref<1xf32, #tpu.memory_space<smem>>
    %5 = vector.broadcast %4 : f32 to vector<8x128xf32>
    %6 = arith.addf %3, %5 : vector<8x128xf32>
    %cst = arith.constant 5.000000e-01 : f32
    %7 = vector.broadcast %cst : f32 to vector<8x128xf32>
    %8 = arith.mulf %7, %6 : vector<8x128xf32>
    %9 = math.tanh %8 : vector<8x128xf32>
    %cst_3 = arith.constant 5.000000e-01 : f32
    %10 = vector.broadcast %cst_3 : f32 to vector<8x128xf32>
    %11 = arith.mulf %10, %9 : vector<8x128xf32>
    %cst_4 = arith.constant 5.000000e-01 : f32
    %12 = vector.broadcast %cst_4 : f32 to vector<8x128xf32>
    %13 = arith.addf %11, %12 : vector<8x128xf32>
    %c0_5 = arith.constant 0 : index
    %c0_6 = arith.constant 0 : index
    %14 = vector.load %arg4[%c0_5, %c0_6] : memref<8x128xf32, #tpu.memory_space<vmem>>, vector<8x128xf32>
    tpu.vector_store %arg4[%c0_5, %c0_6], %13 {strides = array<i32>} : memref<8x128xf32, #tpu.memory_space<vmem>>, vector<8x128xf32>,
    return
  }
  func.func @transform_0(%arg0: i32) -> (i32, i32) {
    %c0_i32 = arith.constant 0 : i32
    %c0_i32_0 = arith.constant 0 : i32
    return %arg0, %c0_i32 : i32, i32
  }
  func.func @transform_1(%arg0: i32) -> i32 {
    %c0_i32 = arith.constant 0 : i32
    %c0_i32_0 = arith.constant 0 : i32
    return %c0_i32 : i32
  }
  func.func @transform_2(%arg0: i32) -> i32 {
    %c0_i32 = arith.constant 0 : i32
    %c0_i32_0 = arith.constant 0 : i32
    return %c0_i32 : i32
  }
  func.func @transform_3(%arg0: i32) -> (i32, i32) {
    %c0_i32 = arith.constant 0 : i32
    %c0_i32_0 = arith.constant 0 : i32
    return %arg0, %c0_i32 : i32, i32
  }
}

</mosaic_0001>

<llo_original>
// kernel: tpu_custom_call.1
$region0: #{tpu_custom_call.1}
  #allocation0 [shape = 'u32[]', space=smem, size = 0x4, offset = 0x4, fixed_abs, tag = 'smem constant byte address 0x4 - core index']
  #allocation1 [shape = 'u32[144,128]{1,0:T(1,128)}', space=vmem, size = 0x12000, scoped, tag = 'internal scratch']
  #allocation2 [shape = 'f32[1]{0:T(128)S(6)}', space=smem, size = 0x200, scoped, tag = 'scoped memory for tpu_custom_call.1']
  #allocation3 [shape = 'f32[1]{0:T(128)S(6)}', space=smem, size = 0x200, scoped, tag = 'scoped memory for tpu_custom_call.1']
  %s0 = inlined_call_operand.hbm [shape: f32[8,128], index: 0, kind: input, shape index: {}]
  %s1 = inlined_call_operand.<no memory space> [shape: f32[1], index: 1, kind: input, shape index: {}]
  %s2 = inlined_call_operand.<no memory space> [shape: f32[1], index: 2, kind: input, shape index: {}]
  %s3 = inlined_call_operand.hbm [shape: f32[8,128], index: 3, kind: output, shape index: {}]
  %s4 = sld [smem:[#allocation0]]
  $region26: #{tpu_custom_call.1} parent=0
    _
  %s6 = ssub.s32 1, %s4
  %s7 = scalar_select 0, %s6, %s4
  %8 = sst [smem:[#allocation2]] %s1
  %9 = sst [smem:[#allocation3]] %s2
  $region1: #{tpu_custom_call.1} parent=0
    #allocation4 [shape = 'u8[4096]{0}', space=vmem, size = 0x1000, scoped, tag = 'input window, operand 0, single buffered']
    #allocation5 [shape = 's32[1]{0}', space=sflag, size = 0x4, scoped, tag = 'scoped memory for tpu_custom_call.1']
    #allocation6 [shape = 's32[1]{0}', space=sflag, size = 0x4, scoped, tag = 'scoped memory for tpu_custom_call.1']
    #allocation7 [shape = 'u8[4096]{0}', space=vmem, size = 0x1000, scoped, tag = 'output window, operand 0, single buffered']
    %10 = vsyncpa [#allocation5], 0
    %11 = vsyncpa [#allocation6], 0
    // Predicated region
    $region2: #{tpu_custom_call.1} parent=1 // pred_check
      _
    $region3: #{tpu_custom_call.1} parent=1 // pred_check_branch
      %13 = sbr.rel (0) target = $region5
    $region4: #{tpu_custom_call.1} parent=1 // pred_region
      %s15 = ssub.s32 128, 128
      %16 = vsyncadd [#allocation5], %s15
      %s18 = sshll.u32 [#allocation4], 4
      %s19 = int_to_ptr.vmem [resolvable:$true] %s18
      %21 = dma.hbm_to_vmem [thread:$0]  %s0, 128, %s19, [#allocation5]
    $region5: #{tpu_custom_call.1} parent=1 // pred_fallthru
      _
    // Predicated region
    $region6: #{tpu_custom_call.1} parent=1 // pred_check
      _
    $region7: #{tpu_custom_call.1} parent=1 // pred_check_branch
      %23 = sbr.rel (0) target = $region9
    $region8: #{tpu_custom_call.1} parent=1 // pred_region
      _
    $region9: #{tpu_custom_call.1} parent=1 // pred_fallthru
      _
    // Predicated region
    $region10: #{tpu_custom_call.1} parent=1 // pred_check
      _
    $region11: #{tpu_custom_call.1} parent=1 // pred_check_branch
      %25 = sbr.rel (0) target = $region13
    $region12: #{tpu_custom_call.1} parent=1 // pred_region
      _
    $region13: #{tpu_custom_call.1} parent=1 // pred_fallthru
      _
    // Predicated region
    $region14: #{tpu_custom_call.1} parent=1 // pred_check
      _
    $region15: #{tpu_custom_call.1} parent=1 // pred_check_branch
      %27 = sbr.rel (0) target = $region17
    $region16: #{tpu_custom_call.1} parent=1 // pred_region
      %28 = dma.done [#allocation5], 128
    $region17: #{tpu_custom_call.1} parent=1 // pred_fallthru
      _
    %v29 = vld [vmem:[#allocation4] sm:$0xff]
    %s30 = sld [smem:[#allocation2]]
    %v31 = vstv %s30
    %v32 = vmul.f32 %v29, %v31
    %s33 = sld [smem:[#allocation3]]
    %v34 = vstv %s33
    %v35 = vadd.f32 %v32, %v34
    %v36 = vmul.f32 %v35, 0.5
    %v37 = vtanh.pop %v36
    %v38 = vmul.f32 %v37, 0.5
    %v39 = vadd.f32 %v38, 0.5
    %40 = vst [vmem:[#allocation7] sm:$0xff] %v39
    // Predicated region
    $region18: #{tpu_custom_call.1} parent=1 // pred_check
      _
    $region19: #{tpu_custom_call.1} parent=1 // pred_check_branch
      %42 = sbr.rel (0) target = $region21
    $region20: #{tpu_custom_call.1} parent=1 // pred_region
      %s44 = ssub.s32 128, 128
      %45 = vsyncadd [#allocation6], %s44
      %s47 = sshll.u32 [#allocation7], 4
      %s48 = int_to_ptr.vmem [resolvable:$true] %s47
      %50 = dma.vmem_to_hbm [thread:$0]  %s48, 128, %s3, [#allocation6]
    $region21: #{tpu_custom_call.1} parent=1 // pred_fallthru
      _
    // Predicated region
    $region22: #{tpu_custom_call.1} parent=1 // pred_check
      _
    $region23: #{tpu_custom_call.1} parent=1 // pred_check_branch
      %52 = sbr.rel (0) target = $region25
    $region24: #{tpu_custom_call.1} parent=1 // pred_region
      %53 = dma.done [#allocation6], 128
    $region25: #{tpu_custom_call.1} parent=1 // pred_fallthru
      _
    %54 = vsyncpa [#allocation5], 1
    %55 = vsyncpa [#allocation6], 1

</llo_original>
